<compile_context>
chip_gen: v7x
topology: tpu7x:2x2x1
jax: 0.10.0
libtpu: 0.0.40
codegen_flags: <defaults>
</compile_context>

<pallas_src>
import functools

import jax
import jax.numpy as jnp
from jax.experimental import pallas as pl
from jax.experimental.pallas import tpu as pltpu

_LANE = 128     # vreg lane width: keep feature dims lane-dense
_SUBLANE = 8    # vreg sublane count: batch tiles are multiples of 8


def _round_up(x, m):
    return (x + m - 1) // m * m


def _perceptron_kernel(x_ref, w1_ref, b1_ref, w2_ref, b2_ref, o_ref):
    # x_ref:  [TB, in_dim]   (in_dim tiny, e.g. 2)
    # w1_ref: [in_dim, Hp]   (hidden zero-padded to 128 lanes)
    # b1_ref: [1, Hp]
    # w2_ref: [Hp, Op]       (out_dim zero-padded to 128 lanes)
    # b2_ref: [1, Op]
    # o_ref:  [TB, Op]       lane-dense output -> unmasked stores
    x = x_ref[...]
    w1 = w1_ref[...]

    # Layer 1 on the VPU: K = in_dim is tiny, so an MXU matmul would be <2%
    # utilized and pay MXU push/pop latency.  Statically unrolled broadcast
    # FMAs instead.  Bias is read once per grid step (one vreg).
    acc = b1_ref[...]                           # [1, Hp], broadcasts to [TB, Hp]
    for k in range(x_ref.shape[1]):             # static unroll over in_dim
        acc = acc + x[:, k:k + 1] * w1[k:k + 1, :]
    h = jnp.maximum(acc, 0.0)                   # [TB, Hp]

    # Layer 2 on the MXU: [TB, Hp] @ [Hp, Op], f32 accumulation.
    y = jnp.dot(h, w2_ref[...], preferred_element_type=jnp.float32)
    o_ref[...] = (y + b2_ref[...]).astype(o_ref.dtype)


@functools.partial(jax.jit, static_argnames=("block_b",))
def perceptron_forward(x, w1_t, b1, w2_t, b2, *, block_b=512):
    """Forward pass of Linear(in->H) -> ReLU -> Linear(H->out).

    x:    [B, in_dim]
    w1_t: [in_dim, H]    (torch layer1.weight transposed)
    b1:   [H]
    w2_t: [H, out_dim]   (torch layer2.weight transposed)
    b2:   [out_dim]
    """
    B, in_dim = x.shape
    hidden = w1_t.shape[1]
    out_dim = w2_t.shape[1]
    dtype = x.dtype

    # Zero-pad feature dims to the 128-lane width (exact: relu(0)=0, zero rows
    # of w2 contribute nothing) so every vreg / store is lane-dense.
    hp = _round_up(hidden, _LANE)
    op = _round_up(out_dim, _LANE)
    w1p = jnp.zeros((in_dim, hp), dtype).at[:, :hidden].set(w1_t)
    b1p = jnp.zeros((1, hp), dtype).at[:, :hidden].set(b1.reshape(1, hidden))
    w2p = jnp.zeros((hp, op), dtype).at[:hidden, :out_dim].set(w2_t)
    b2p = jnp.zeros((1, op), dtype).at[:, :out_dim].set(b2.reshape(1, out_dim))

    # Batch tile: multiple of 8 sublanes, capped at block_b.  Pad B up to a
    # whole number of tiles; padded rows are dropped after the call.
    tb = min(block_b, _round_up(B, _SUBLANE))
    bp = _round_up(B, tb)
    xp = x if bp == B else jnp.zeros((bp, in_dim), dtype).at[:B].set(x)
    grid = (bp // tb,)

    flops = 2 * bp * (in_dim * hp + hp * op)
    bytes_accessed = 4 * (bp * in_dim + in_dim * hp + hp + hp * op + op + bp * op)

    out = pl.pallas_call(
        _perceptron_kernel,
        out_shape=jax.ShapeDtypeStruct((bp, op), dtype),
        grid=grid,
        in_specs=[
            pl.BlockSpec((tb, in_dim), lambda i: (i, 0)),   # x: batch-tiled
            pl.BlockSpec((in_dim, hp), lambda i: (0, 0)),   # weights VMEM-resident
            pl.BlockSpec((1, hp), lambda i: (0, 0)),
            pl.BlockSpec((hp, op), lambda i: (0, 0)),
            pl.BlockSpec((1, op), lambda i: (0, 0)),
        ],
        out_specs=pl.BlockSpec((tb, op), lambda i: (i, 0)),  # lane-dense output
        compiler_params=pltpu.CompilerParams(
            dimension_semantics=("parallel",),               # megacore on v7x
        ),
        cost_estimate=pl.CostEstimate(
            flops=flops, transcendentals=0, bytes_accessed=bytes_accessed),
    )(xp, w1p, b1p, w2p, b2p)

    return out[:B, :out_dim]


if __name__ == "__main__":
    key = jax.random.PRNGKey(0)
    in_dim, hidden, out_dim, batch = 2, 40, 2, 8
    std = 0.01  # torch: nn.init.normal_(p, mean=0, std=0.01) for every param

    kx, k1, k2, k3, k4 = jax.random.split(key, 5)
    x = jax.random.normal(kx, (batch, in_dim), jnp.float32)
    w1 = jax.random.normal(k1, (hidden, in_dim), jnp.float32) * std   # layer1.weight
    b1 = jax.random.normal(k2, (hidden,), jnp.float32) * std          # layer1.bias
    w2 = jax.random.normal(k3, (out_dim, hidden), jnp.float32) * std  # layer2.weight
    b2 = jax.random.normal(k4, (out_dim,), jnp.float32) * std         # layer2.bias

    y = perceptron_forward(x, w1.T, b1, w2.T, b2)
    y = jax.block_until_ready(y)

    # Plain-JAX reference (same math as the torch forward).
    y_ref = jnp.maximum(x @ w1.T + b1[None, :], 0.0) @ w2.T + b2[None, :]
    assert y.shape == (batch, out_dim)
    assert jnp.allclose(y, y_ref, atol=1e-5, rtol=1e-5), float(
        jnp.max(jnp.abs(y - y_ref)))

    print("KERNEL_OK")
</pallas_src>

<mosaic_0001>
module attributes {stable_mosaic.version = 11 : i64} {
  func.func @_perceptron_kernel(%arg0: i32, %arg1: memref<8x2xf32, #tpu.memory_space<vmem>>, %arg2: memref<2x128xf32, #tpu.memory_space<vmem>>, %arg3: memref<1x128xf32, #tpu.memory_space<vmem>>, %arg4: memref<128x128xf32, #tpu.memory_space<vmem>>, %arg5: memref<1x128xf32, #tpu.memory_space<vmem>>, %arg6: memref<8x128xf32, #tpu.memory_space<vmem>>) attributes {dimension_semantics = [#tpu.dimension_semantics<parallel>], iteration_bounds = array<i64: 1>, scalar_prefetch = 0 : i64, scratch_operands = 0 : i64, tpu.core_type = #tpu.core_type<tc>, window_params = [{transform_indices = @transform_0, window_bounds = array<i64: 8, 2>}, {pipeline_mode = #tpu.pipeline_mode<synchronous>, transform_indices = @transform_1, window_bounds = array<i64: 2, 128>}, {pipeline_mode = #tpu.pipeline_mode<synchronous>, transform_indices = @transform_2, window_bounds = array<i64: 1, 128>}, {pipeline_mode = #tpu.pipeline_mode<synchronous>, transform_indices = @transform_3, window_bounds = array<i64: 128, 128>}, {pipeline_mode = #tpu.pipeline_mode<synchronous>, transform_indices = @transform_4, window_bounds = array<i64: 1, 128>}, {transform_indices = @transform_5, window_bounds = array<i64: 8, 128>}]} {
    %c0 = arith.constant 0 : index
    %c0_0 = arith.constant 0 : index
    %0 = vector.load %arg1[%c0, %c0_0] : memref<8x2xf32, #tpu.memory_space<vmem>>, vector<8x2xf32>
    %c0_1 = arith.constant 0 : index
    %c0_2 = arith.constant 0 : index
    %1 = vector.load %arg2[%c0_1, %c0_2] : memref<2x128xf32, #tpu.memory_space<vmem>>, vector<2x128xf32>
    %c0_3 = arith.constant 0 : index
    %c0_4 = arith.constant 0 : index
    %2 = vector.load %arg3[%c0_3, %c0_4] : memref<1x128xf32, #tpu.memory_space<vmem>>, vector<1x128xf32>
    %3 = vector.extract_strided_slice %0 {offsets = [0, 0], sizes = [8, 1], strides = [1, 1]} : vector<8x2xf32> to vector<8x1xf32>
    %4 = vector.extract_strided_slice %1 {offsets = [0, 0], sizes = [1, 128], strides = [1, 1]} : vector<2x128xf32> to vector<1x128xf32>
    %5 = vector.broadcast %3 : vector<8x1xf32> to vector<8x128xf32>
    %6 = vector.broadcast %4 : vector<1x128xf32> to vector<8x128xf32>
    %7 = arith.mulf %5, %6 : vector<8x128xf32>
    %8 = vector.broadcast %2 : vector<1x128xf32> to vector<8x128xf32>
    %9 = arith.addf %8, %7 : vector<8x128xf32>
    %10 = vector.extract_strided_slice %0 {offsets = [0, 1], sizes = [8, 1], strides = [1, 1]} : vector<8x2xf32> to vector<8x1xf32>
    %11 = vector.extract_strided_slice %1 {offsets = [1, 0], sizes = [1, 128], strides = [1, 1]} : vector<2x128xf32> to vector<1x128xf32>
    %12 = vector.broadcast %10 : vector<8x1xf32> to vector<8x128xf32>
    %13 = vector.broadcast %11 : vector<1x128xf32> to vector<8x128xf32>
    %14 = arith.mulf %12, %13 : vector<8x128xf32>
    %15 = arith.addf %9, %14 : vector<8x128xf32>
    %cst = arith.constant 0.000000e+00 : f32
    %16 = vector.broadcast %cst : f32 to vector<8x128xf32>
    %17 = arith.maximumf %15, %16 : vector<8x128xf32>
    %c0_5 = arith.constant 0 : index
    %c0_6 = arith.constant 0 : index
    %18 = vector.load %arg4[%c0_5, %c0_6] : memref<128x128xf32, #tpu.memory_space<vmem>>, vector<128x128xf32>
    %cst_7 = arith.constant dense<0.000000e+00> : vector<8x128xf32>
    %19 = tpu.matmul %17, %18, %cst_7 {dimension_numbers = #tpu.dot_dimension_numbers<[1], [0], [0], [1], [0, 0, 1, 1], [], []>} : vector<8x128xf32>, vector<128x128xf32>, vector<8x128xf32> -> vector<8x128xf32>
    %c0_8 = arith.constant 0 : index
    %c0_9 = arith.constant 0 : index
    %20 = vector.load %arg5[%c0_8, %c0_9] : memref<1x128xf32, #tpu.memory_space<vmem>>, vector<1x128xf32>
    %21 = vector.broadcast %20 : vector<1x128xf32> to vector<8x128xf32>
    %22 = arith.addf %19, %21 : vector<8x128xf32>
    %c0_10 = arith.constant 0 : index
    %c0_11 = arith.constant 0 : index
    %23 = vector.load %arg6[%c0_10, %c0_11] : memref<8x128xf32, #tpu.memory_space<vmem>>, vector<8x128xf32>
    tpu.vector_store %arg6[%c0_10, %c0_11], %22 {strides = array<i32>} : memref<8x128xf32, #tpu.memory_space<vmem>>, vector<8x128xf32>,
    return
  }
  func.func @transform_0(%arg0: i32) -> (i32, i32) {
    %c0_i32 = arith.constant 0 : i32
    %c0_i32_0 = arith.constant 0 : i32
    return %arg0, %c0_i32 : i32, i32
  }
  func.func @transform_1(%arg0: i32) -> (i32, i32) {
    %c0_i32 = arith.constant 0 : i32
    %c0_i32_0 = arith.constant 0 : i32
    %c0_i32_1 = arith.constant 0 : i32
    return %c0_i32, %c0_i32_0 : i32, i32
  }
  func.func @transform_2(%arg0: i32) -> (i32, i32) {
    %c0_i32 = arith.constant 0 : i32
    %c0_i32_0 = arith.constant 0 : i32
    %c0_i32_1 = arith.constant 0 : i32
    return %c0_i32, %c0_i32_0 : i32, i32
  }
  func.func @transform_3(%arg0: i32) -> (i32, i32) {
    %c0_i32 = arith.constant 0 : i32
    %c0_i32_0 = arith.constant 0 : i32
    %c0_i32_1 = arith.constant 0 : i32
    return %c0_i32, %c0_i32_0 : i32, i32
  }
  func.func @transform_4(%arg0: i32) -> (i32, i32) {
    %c0_i32 = arith.constant 0 : i32
    %c0_i32_0 = arith.constant 0 : i32
    %c0_i32_1 = arith.constant 0 : i32
    return %c0_i32, %c0_i32_0 : i32, i32
  }
  func.func @transform_5(%arg0: i32) -> (i32, i32) {
    %c0_i32 = arith.constant 0 : i32
    %c0_i32_0 = arith.constant 0 : i32
    return %arg0, %c0_i32 : i32, i32
  }
}

</mosaic_0001>

<llo_original>
// kernel: perceptron_forward.1
$region0: #{perceptron_forward.1}
  #allocation0 [shape = 'u32[]', space=smem, size = 0x4, offset = 0x4, fixed_abs, tag = 'smem constant byte address 0x4 - core index']
  #allocation1 [shape = 'u32[144,128]{1,0:T(1,128)}', space=vmem, size = 0x12000, scoped, tag = 'internal scratch']
  %s0 = inlined_call_operand.vmem [shape: f32[8,2], index: 0, kind: input, shape index: {}]
  %s1 = inlined_call_operand.vmem [shape: f32[2,128], index: 1, kind: input, shape index: {}]
  %s2 = inlined_call_operand.vmem [shape: f32[1,128], index: 2, kind: input, shape index: {}]
  %s3 = inlined_call_operand.vmem [shape: f32[128,128], index: 3, kind: input, shape index: {}]
  %s4 = inlined_call_operand.vmem [shape: f32[1,128], index: 4, kind: input, shape index: {}]
  %s5 = inlined_call_operand.vmem [shape: f32[8,128], index: 5, kind: output, shape index: {}]
  %s6 = sld [smem:[#allocation0]]
  $region30: #{perceptron_forward.1} parent=0
    _
  %s8 = ssub.s32 1, %s6
  %s9 = scalar_select 0, %s8, %s6
  // Predicated region
  $region2: #{perceptron_forward.1} parent=0 // pred_check
    _
  $region3: #{perceptron_forward.1} parent=0 // pred_check_branch
    %11 = sbr.rel (0) target = $region5
  $region4: #{perceptron_forward.1} parent=0 // pred_region
    _
  $region5: #{perceptron_forward.1} parent=0 // pred_fallthru
    _
  // Predicated region
  $region6: #{perceptron_forward.1} parent=0 // pred_check
    _
  $region7: #{perceptron_forward.1} parent=0 // pred_check_branch
    %13 = sbr.rel (0) target = $region9
  $region8: #{perceptron_forward.1} parent=0 // pred_region
    _
  $region9: #{perceptron_forward.1} parent=0 // pred_fallthru
    _
  // Predicated region
  $region10: #{perceptron_forward.1} parent=0 // pred_check
    _
  $region11: #{perceptron_forward.1} parent=0 // pred_check_branch
    %15 = sbr.rel (0) target = $region13
  $region12: #{perceptron_forward.1} parent=0 // pred_region
    _
  $region13: #{perceptron_forward.1} parent=0 // pred_fallthru
    _
  // Predicated region
  $region14: #{perceptron_forward.1} parent=0 // pred_check
    _
  $region15: #{perceptron_forward.1} parent=0 // pred_check_branch
    %17 = sbr.rel (0) target = $region17
  $region16: #{perceptron_forward.1} parent=0 // pred_region
    _
  $region17: #{perceptron_forward.1} parent=0 // pred_fallthru
    _
  // Predicated region
  $region18: #{perceptron_forward.1} parent=0 // pred_check
    _
  $region19: #{perceptron_forward.1} parent=0 // pred_check_branch
    %19 = sbr.rel (0) target = $region21
  $region20: #{perceptron_forward.1} parent=0 // pred_region
    _
  $region21: #{perceptron_forward.1} parent=0 // pred_fallthru
    _
  %v20 = vld [vmem:[%s0] sm:$0xff]
  %v21 = vld [vmem:[%s1] sm:$0x3]
  %v22 = vld [vmem:[%s2] sm:$0x1]
  %24 = vset.pattern.permute.xlu0 0
  %25 = vperm.xlu0 %24, %v20
  %v26 = vpop.permute.xlu0 %25
  %v28 = vlaneseq
  %v29 = vshrl.u32 %v28, 7
  %v30 = vsub.s32 0, %v29
  %v31 = vrot.slane %v21, %v30
  %v32 = vmul.f32 %v26, %v31
  %v34 = vlaneseq
  %v35 = vshrl.u32 %v34, 7
  %v36 = vsub.s32 0, %v35
  %v37 = vrot.slane %v22, %v36
  %v39 = vadd.f32 %v37, %v32
  %40 = vset.pattern.permute.xlu0 1
  %41 = vperm.xlu0 %40, %v20
  %v42 = vpop.permute.xlu0 %41
  %v44 = vlaneseq
  %v45 = vshrl.u32 %v44, 7
  %v46 = vsub.s32 1, %v45
  %v47 = vrot.slane %v21, %v46
  %v48 = vmul.f32 %v42, %v47
  %v49 = vadd.f32 %v39, %v48
  %v50 = vmax.f32 %v49, 0.0
  %v51 = vld [vmem:[%s3] sm:$0xff]
  %v52 = vld [vmem:[%s3 + $0x8] sm:$0xff]
  %v53 = vld [vmem:[%s3 + $0x10] sm:$0xff]
  %v54 = vld [vmem:[%s3 + $0x18] sm:$0xff]
  %v55 = vld [vmem:[%s3 + $0x20] sm:$0xff]
  %v56 = vld [vmem:[%s3 + $0x28] sm:$0xff]
  %v57 = vld [vmem:[%s3 + $0x30] sm:$0xff]
  %v58 = vld [vmem:[%s3 + $0x38] sm:$0xff]
  %v59 = vld [vmem:[%s3 + $0x40] sm:$0xff]
  %v60 = vld [vmem:[%s3 + $0x48] sm:$0xff]
  %v61 = vld [vmem:[%s3 + $0x50] sm:$0xff]
  %v62 = vld [vmem:[%s3 + $0x58] sm:$0xff]
  %v63 = vld [vmem:[%s3 + $0x60] sm:$0xff]
  %v64 = vld [vmem:[%s3 + $0x68] sm:$0xff]
  %v65 = vld [vmem:[%s3 + $0x70] sm:$0xff]
  %v66 = vld [vmem:[%s3 + $0x78] sm:$0xff]
  %v67 = vld [vmem:[%s4] sm:$0x1]
  %v69 = vlaneseq
  %v70 = vshrl.u32 %v69, 7
  %v71 = vsub.s32 0, %v70
  %v72 = vrot.slane %v67, %v71
  %74 = vmatprep.subr.mxu0 0.0
  %75 = vmatpush1.msra.mxu0 %v51
  %76 = vmatprep.subr.mxu0 0.0
  %77 = vmatpush1.msra.mxu0 %v52
  %78 = vmatprep.subr.mxu0 0.0
  %79 = vmatpush1.msra.mxu0 %v53
  %80 = vmatprep.subr.mxu0 0.0
  %81 = vmatpush1.msra.mxu0 %v54
  %82 = vmatprep.subr.mxu0 0.0
  %83 = vmatpush1.msra.mxu0 %v55
  %84 = vmatprep.subr.mxu0 0.0
  %85 = vmatpush1.msra.mxu0 %v56
  %86 = vmatprep.subr.mxu0 0.0
  %87 = vmatpush1.msra.mxu0 %v57
  %88 = vmatprep.subr.mxu0 0.0
  %89 = vmatpush1.msra.mxu0 %v58
  %90 = vmatprep.subr.mxu0 0.0
  %91 = vmatpush1.msra.mxu0 %v59
  %92 = vmatprep.subr.mxu0 0.0
  %93 = vmatpush1.msra.mxu0 %v60
  %94 = vmatprep.subr.mxu0 0.0
  %95 = vmatpush1.msra.mxu0 %v61
  %96 = vmatprep.subr.mxu0 0.0
  %97 = vmatpush1.msra.mxu0 %v62
  %98 = vmatprep.subr.mxu0 0.0
  %99 = vmatpush1.msra.mxu0 %v63
  %100 = vmatprep.subr.mxu0 0.0
  %101 = vmatpush1.msra.mxu0 %v64
  %102 = vmatprep.subr.mxu0 0.0
  %103 = vmatpush1.msra.mxu0 %v65
  %104 = vmatprep.subr.mxu0 0.0
  %105 = vmatpush1.msra.mxu0 %v66
  %106 = vmatprep.subr.mxu0 0.0
  %107 = vmatpush1.msra.mxu0 0.0
  %108 = vmatprep.subr.mxu0 0.0
  %109 = vmatpush1.msra.mxu0 0.0
  %110 = vmatprep.subr.mxu0 0.0
  %111 = vmatpush1.msra.mxu0 0.0
  %112 = vmatprep.subr.mxu0 0.0
  %113 = vmatpush1.msra.mxu0 0.0
  %114 = vmatprep.subr.mxu0 0.0
  %115 = vmatpush1.msra.mxu0 0.0
  %116 = vmatprep.subr.mxu0 0.0
  %117 = vmatpush1.msra.mxu0 0.0
  %118 = vmatprep.subr.mxu0 0.0
  %119 = vmatpush1.msra.mxu0 0.0
  %120 = vmatprep.subr.mxu0 0.0
  %121 = vmatpush1.msra.mxu0 0.0
  %122 = vmatprep.subr.mxu0 0.0
  %123 = vmatpush1.msra.mxu0 0.0
  %124 = vmatprep.subr.mxu0 0.0
  %125 = vmatpush1.msra.mxu0 0.0
  %126 = vmatprep.subr.mxu0 0.0
  %127 = vmatpush1.msra.mxu0 0.0
  %128 = vmatprep.subr.mxu0 0.0
  %129 = vmatpush1.msra.mxu0 0.0
  %130 = vmatprep.subr.mxu0 0.0
  %131 = vmatpush1.msra.mxu0 0.0
  %132 = vmatprep.subr.mxu0 0.0
  %133 = vmatpush1.msra.mxu0 0.0
  %134 = vmatprep.subr.mxu0 0.0
  %135 = vmatpush1.msra.mxu0 0.0
  %136 = vmatprep.subr.mxu0 0.0
  %137 = vmatpush1.msra.mxu0 0.0
  %138 = vmatprep.mubr.f32.mxu0 0.0
  %139 = vmatmul.mubr.f32.gmra.mrb[0].mxu0 %v50
  %v140 = vpop.f32.mrb[0].mxu0
  %v141 = vadd.f32 %v72, %v140
  %v142 = vpop.f32.mrb[0].mxu0
  %143 = vdwg.mxu0
  %144 = vst [vmem:[%s5] sm:$0xff] %v141
  // Predicated region
  $region22: #{perceptron_forward.1} parent=0 // pred_check
    _
  $region23: #{perceptron_forward.1} parent=0 // pred_check_branch
    %146 = sbr.rel (0) target = $region25
  $region24: #{perceptron_forward.1} parent=0 // pred_region
    _
  $region25: #{perceptron_forward.1} parent=0 // pred_fallthru
    _
  // Predicated region
  $region26: #{perceptron_forward.1} parent=0 // pred_check
    _
  $region27: #{perceptron_forward.1} parent=0 // pred_check_branch
    %148 = sbr.rel (0) target = $region29
  $region28: #{perceptron_forward.1} parent=0 // pred_region
    _
  $region29: #{perceptron_forward.1} parent=0 // pred_fallthru
    _

</llo_original>
